<compile_context>
chip_gen: v7x
topology: tpu7x:2x2x1
jax: 0.10.0
libtpu: 0.0.40
codegen_flags: <defaults>
</compile_context>

<pallas_src>
from functools import partial

import jax
import jax.numpy as jnp
import numpy as np
from jax.experimental import pallas as pl
from jax.experimental.pallas import tpu as pltpu


def _round_up(x, m):
    return -(-x // m) * m


def _vmem_limits():
    """(vmem_limit_bytes, tile_budget_bytes), sized per TPU generation."""
    cap = 64 * 1024 * 1024                      # conservative default = v7x physical VMEM
    try:
        cap = int(getattr(pltpu.get_tpu_info(), "vmem_capacity_bytes", cap))
    except Exception:
        pass
    # ~48 MiB limit / ~38 MiB live tiles on v7x; ~96 MiB / ~76 MiB on v5e/v6e.
    return int(cap * 0.75), int(cap * 0.60)


def _pick_tile_q(Q, B, Cin, Cout, W, halo, budget_bytes):
    """Largest lane-dense (multiple-of-128) spatial tile fitting the VMEM budget."""
    dt = 4  # float32 bytes

    def vmem_need(t):
        n_q = -(-Q // t)
        qp = n_q * t
        lf = (-(-(qp + halo) // W) + 1) * W
        resident = 2 * Cin * lf * dt                    # double-buffered padded image
        blocks = 2 * (Cout + 2) * t * dt                # output + mask blocks (x2 buffers)
        temps = (3 * Cin + 3 * Cout + 4) * t * dt       # window / tap slices / accumulators
        consts = 2 * (9 * Cout * Cin + Cout) * dt       # weights + bias
        return resident + blocks + temps + consts

    t_max = _round_up(Q, 128)
    if B == 1 and Q > 128:
        # Keep >=2 grid programs so both v7x TensorCores get work.
        t_max = min(t_max, _round_up(-(-Q // 2), 128))

    best = None
    t = t_max
    while t >= 128:
        if vmem_need(t) <= budget_bytes:
            if best is None:
                best = t
            if Q % t == 0:                  # exact tiling: no tail junk / wrapper slice
                return t
            if t * 4 <= best:               # don't trade large tiles for divisibility
                break
        t -= 128
    # TODO(synk): if even a 128-wide tile exceeds the budget (huge Cin*H*W),
    #             switch to a manual row-streaming DMA pipeline.
    return best if best is not None else 128


def _conv_block_kernel(w_ref, b_ref, m_ref, x_ref, o_ref, *, alpha, width, tile_q, halo):
    """One (batch, spatial-tile) grid step.

    w_ref: (9, Cout, Cin)  per-tap weight matrices, tap t = dy*3 + dx
    b_ref: (Cout, 1)       bias
    m_ref: (2, tile_q)     [0]: left-column lane mask, [1]: right-column lane mask
    x_ref: (Cin, Lf)       flattened, height-padded image (VMEM-resident per batch)
    o_ref: (Cout, tile_q)  flattened output tile
    """
    cout = w_ref.shape[1]
    q0 = pl.multiple_of(pl.program_id(1) * tile_q, 128)
    # One contiguous window covering this tile plus the 3x3 halo; the 9 tap
    # views below are static lane-shifted slices of it (VMEM-local, no HBM).
    win = x_ref[:, pl.ds(q0, tile_q + halo)]                 # (Cin, tile_q + halo)
    masks = m_ref[...]                                       # (2, tile_q)

    acc = jnp.zeros((cout, tile_q), dtype=jnp.float32)
    for dx in range(3):                                      # kernel column
        col = jnp.zeros((cout, tile_q), dtype=jnp.float32)
        for dy in range(3):                                  # kernel row
            off = (dy + 1) * width + (dx - 1)                # static lane offset
            rhs = win[:, off:off + tile_q]                   # (Cin, tile_q)
            col = col + jnp.dot(w_ref[dy * 3 + dx], rhs,
                                preferred_element_type=jnp.float32)
        if dx == 0:
            col = col * masks[0:1, :]     # zero contributions that wrapped from the left edge
        elif dx == 2:
            col = col * masks[1:2, :]     # zero contributions that wrapped from the right edge
        acc = acc + col

    acc = acc + b_ref[...]                                   # broadcast bias
    o_ref[...] = jnp.where(acc >= 0.0, acc, alpha * acc).astype(o_ref.dtype)


def conv_block(x, weight, bias, *, alpha=0.1):
    """x: (B, Cin, H, W) f32; weight: (Cout, Cin, 3, 3); bias: (Cout,) -> (B, Cout, H, W)."""
    B, Cin, H, W = x.shape
    Cout = weight.shape[0]
    Q = H * W                                # flattened output positions
    halo = 3 * W + 2                         # covers the largest tap offset (3W+1)

    vmem_limit, tile_budget = _vmem_limits()
    tile_q = _pick_tile_q(Q, B, Cin, Cout, W, halo, tile_budget)
    n_q = -(-Q // tile_q)
    Qp = n_q * tile_q

    # Single wrapper-side pad (layout plumbing only): 2 zero rows on top so all
    # tap offsets are non-negative, plus enough rows below for the last halo.
    rows_needed = -(-(Qp + halo) // W)
    pad_bottom = max(rows_needed - (H + 2), 1)
    xpad = jnp.pad(x, ((0, 0), (0, 0), (2, pad_bottom), (0, 0)))
    Lf = (H + 2 + pad_bottom) * W
    xf = xpad.reshape(B, Cin, Lf)

    # Per-tap weight matrices: tap t = dy*3 + dx -> (Cout, Cin).
    w_taps = jnp.transpose(weight, (2, 3, 0, 1)).reshape(9, Cout, Cin)
    b_col = bias.reshape(Cout, 1)

    # Lane masks for the image's left / right borders (kernel columns dx=0 / dx=2).
    col_idx = jnp.arange(Qp, dtype=jnp.int32) % W
    masks = jnp.stack([(col_idx != 0), (col_idx != W - 1)]).astype(x.dtype)   # (2, Qp)

    out_flat = pl.pallas_call(
        partial(_conv_block_kernel, alpha=alpha, width=W, tile_q=tile_q, halo=halo),
        out_shape=jax.ShapeDtypeStruct((B, Cout, Qp), x.dtype),
        grid=(B, n_q),
        in_specs=[
            pl.BlockSpec((9, Cout, Cin), lambda b, q: (0, 0, 0)),    # resident weights
            pl.BlockSpec((Cout, 1), lambda b, q: (0, 0)),            # resident bias
            pl.BlockSpec((2, tile_q), lambda b, q: (0, q)),          # border masks
            pl.BlockSpec((None, Cin, Lf), lambda b, q: (b, 0, 0)),   # per-batch resident image
        ],
        out_specs=pl.BlockSpec((None, Cout, tile_q), lambda b, q: (b, 0, q)),
        compiler_params=pltpu.CompilerParams(
            dimension_semantics=("parallel", "parallel"),
            vmem_limit_bytes=vmem_limit,
        ),
    )(w_taps, b_col, masks, xf)

    if Qp != Q:
        out_flat = out_flat[:, :, :Q]
    return out_flat.reshape(B, Cout, H, W)


def ref_forward(x, weight, bias, alpha=0.1):
    """Pure-JAX reference of Conv2d(k=3, s=1, p=1) + LeakyReLU(alpha)."""
    out = jax.lax.conv_general_dilated(
        x, weight, window_strides=(1, 1), padding=((1, 1), (1, 1)),
        dimension_numbers=("NCHW", "OIHW", "NCHW"),
        precision=jax.lax.Precision.HIGHEST)
    out = out + bias[None, :, None, None]
    return jnp.where(out >= 0.0, out, alpha * out)


if __name__ == "__main__":
    B, Cin, Cout, H, W = 2, 4, 8, 16, 16
    key = jax.random.PRNGKey(0)
    kx, kw, kb = jax.random.split(key, 3)
    x = jax.random.normal(kx, (B, Cin, H, W), dtype=jnp.float32)
    weight = 0.1 * jax.random.normal(kw, (Cout, Cin, 3, 3), dtype=jnp.float32)
    bias = 0.1 * jax.random.normal(kb, (Cout,), dtype=jnp.float32)

    out = conv_block(x, weight, bias, alpha=0.1)
    jax.block_until_ready(out)

    ref = ref_forward(x, weight, bias, alpha=0.1)
    np.testing.assert_allclose(np.asarray(out), np.asarray(ref),
                               rtol=1e-4, atol=1e-4)
    print("KERNEL_OK")
</pallas_src>

<mosaic_0001>
module attributes {stable_mosaic.version = 11 : i64} {
  func.func @_conv_block_kernel(%arg0: i32, %arg1: i32, %arg2: memref<9x8x4xf32, #tpu.memory_space<vmem>>, %arg3: memref<8x1xf32, #tpu.memory_space<vmem>>, %arg4: memref<2x256xf32, #tpu.memory_space<vmem>>, %arg5: memref<1x4x320xf32, #tpu.memory_space<vmem>>, %arg6: memref<1x8x256xf32, #tpu.memory_space<vmem>>) attributes {dimension_semantics = [#tpu.dimension_semantics<parallel>, #tpu.dimension_semantics<parallel>], iteration_bounds = array<i64: 2, 1>, scalar_prefetch = 0 : i64, scratch_operands = 0 : i64, tpu.core_type = #tpu.core_type<tc>, window_params = [{pipeline_mode = #tpu.pipeline_mode<synchronous>, transform_indices = @transform_0, window_bounds = array<i64: 9, 8, 4>}, {pipeline_mode = #tpu.pipeline_mode<synchronous>, transform_indices = @transform_1, window_bounds = array<i64: 8, 1>}, {transform_indices = @transform_2, window_bounds = array<i64: 2, 256>}, {transform_indices = @transform_3, window_bounds = array<i64: 1, 4, 320>}, {transform_indices = @transform_4, window_bounds = array<i64: 1, 8, 256>}]} {
    %c256_i32 = arith.constant 256 : i32
    %0 = arith.muli %arg1, %c256_i32 : i32
    %1 = tpu.assume_multiple %0, 128 : i32
    %c0 = arith.constant 0 : index
    %c0_0 = arith.constant 0 : index
    %2 = arith.index_cast %1 : i32 to index
    %3 = vector.load %arg5[%c0, %c0_0, %2] : memref<1x4x320xf32, #tpu.memory_space<vmem>>, vector<1x4x306xf32>
    %4 = vector.shape_cast %3 : vector<1x4x306xf32> to vector<4x306xf32>
    %c0_1 = arith.constant 0 : index
    %c0_2 = arith.constant 0 : index
    %5 = vector.load %arg4[%c0_1, %c0_2] : memref<2x256xf32, #tpu.memory_space<vmem>>, vector<2x256xf32>
    %cst = arith.constant 0.000000e+00 : f32
    %6 = vector.broadcast %cst : f32 to vector<8x256xf32>
    %cst_3 = arith.constant 0.000000e+00 : f32
    %7 = vector.broadcast %cst_3 : f32 to vector<8x256xf32>
    %8 = vector.extract_strided_slice %4 {offsets = [0, 15], sizes = [4, 256], strides = [1, 1]} : vector<4x306xf32> to vector<4x256xf32>
    %c0_4 = arith.constant 0 : index
    %c0_5 = arith.constant 0 : index
    %c0_6 = arith.constant 0 : index
    %9 = vector.load %arg2[%c0_4, %c0_5, %c0_6] : memref<9x8x4xf32, #tpu.memory_space<vmem>>, vector<1x8x4xf32>
    %10 = vector.shape_cast %9 : vector<1x8x4xf32> to vector<8x4xf32>
    %cst_7 = arith.constant dense<0.000000e+00> : vector<8x256xf32>
    %11 = tpu.matmul %10, %8, %cst_7 {dimension_numbers = #tpu.dot_dimension_numbers<[1], [0], [0], [1], [0, 0, 1, 1], [], []>} : vector<8x4xf32>, vector<4x256xf32>, vector<8x256xf32> -> vector<8x256xf32>
    %12 = arith.addf %7, %11 : vector<8x256xf32>
    %13 = vector.extract_strided_slice %4 {offsets = [0, 31], sizes = [4, 256], strides = [1, 1]} : vector<4x306xf32> to vector<4x256xf32>
    %c3 = arith.constant 3 : index
    %c0_8 = arith.constant 0 : index
    %c0_9 = arith.constant 0 : index
    %14 = vector.load %arg2[%c3, %c0_8, %c0_9] : memref<9x8x4xf32, #tpu.memory_space<vmem>>, vector<1x8x4xf32>
    %15 = vector.shape_cast %14 : vector<1x8x4xf32> to vector<8x4xf32>
    %cst_10 = arith.constant dense<0.000000e+00> : vector<8x256xf32>
    %16 = tpu.matmul %15, %13, %cst_10 {dimension_numbers = #tpu.dot_dimension_numbers<[1], [0], [0], [1], [0, 0, 1, 1], [], []>} : vector<8x4xf32>, vector<4x256xf32>, vector<8x256xf32> -> vector<8x256xf32>
    %17 = arith.addf %12, %16 : vector<8x256xf32>
    %18 = vector.extract_strided_slice %4 {offsets = [0, 47], sizes = [4, 256], strides = [1, 1]} : vector<4x306xf32> to vector<4x256xf32>
    %c6 = arith.constant 6 : index
    %c0_11 = arith.constant 0 : index
    %c0_12 = arith.constant 0 : index
    %19 = vector.load %arg2[%c6, %c0_11, %c0_12] : memref<9x8x4xf32, #tpu.memory_space<vmem>>, vector<1x8x4xf32>
    %20 = vector.shape_cast %19 : vector<1x8x4xf32> to vector<8x4xf32>
    %cst_13 = arith.constant dense<0.000000e+00> : vector<8x256xf32>
    %21 = tpu.matmul %20, %18, %cst_13 {dimension_numbers = #tpu.dot_dimension_numbers<[1], [0], [0], [1], [0, 0, 1, 1], [], []>} : vector<8x4xf32>, vector<4x256xf32>, vector<8x256xf32> -> vector<8x256xf32>
    %22 = arith.addf %17, %21 : vector<8x256xf32>
    %23 = vector.extract_strided_slice %5 {offsets = [0, 0], sizes = [1, 256], strides = [1, 1]} : vector<2x256xf32> to vector<1x256xf32>
    %24 = vector.broadcast %23 : vector<1x256xf32> to vector<8x256xf32>
    %25 = arith.mulf %22, %24 : vector<8x256xf32>
    %26 = arith.addf %6, %25 : vector<8x256xf32>
    %cst_14 = arith.constant 0.000000e+00 : f32
    %27 = vector.broadcast %cst_14 : f32 to vector<8x256xf32>
    %28 = vector.extract_strided_slice %4 {offsets = [0, 16], sizes = [4, 256], strides = [1, 1]} : vector<4x306xf32> to vector<4x256xf32>
    %c1 = arith.constant 1 : index
    %c0_15 = arith.constant 0 : index
    %c0_16 = arith.constant 0 : index
    %29 = vector.load %arg2[%c1, %c0_15, %c0_16] : memref<9x8x4xf32, #tpu.memory_space<vmem>>, vector<1x8x4xf32>
    %30 = vector.shape_cast %29 : vector<1x8x4xf32> to vector<8x4xf32>
    %cst_17 = arith.constant dense<0.000000e+00> : vector<8x256xf32>
    %31 = tpu.matmul %30, %28, %cst_17 {dimension_numbers = #tpu.dot_dimension_numbers<[1], [0], [0], [1], [0, 0, 1, 1], [], []>} : vector<8x4xf32>, vector<4x256xf32>, vector<8x256xf32> -> vector<8x256xf32>
    %32 = arith.addf %27, %31 : vector<8x256xf32>
    %33 = vector.extract_strided_slice %4 {offsets = [0, 32], sizes = [4, 256], strides = [1, 1]} : vector<4x306xf32> to vector<4x256xf32>
    %c4 = arith.constant 4 : index
    %c0_18 = arith.constant 0 : index
    %c0_19 = arith.constant 0 : index
    %34 = vector.load %arg2[%c4, %c0_18, %c0_19] : memref<9x8x4xf32, #tpu.memory_space<vmem>>, vector<1x8x4xf32>
    %35 = vector.shape_cast %34 : vector<1x8x4xf32> to vector<8x4xf32>
    %cst_20 = arith.constant dense<0.000000e+00> : vector<8x256xf32>
    %36 = tpu.matmul %35, %33, %cst_20 {dimension_numbers = #tpu.dot_dimension_numbers<[1], [0], [0], [1], [0, 0, 1, 1], [], []>} : vector<8x4xf32>, vector<4x256xf32>, vector<8x256xf32> -> vector<8x256xf32>
    %37 = arith.addf %32, %36 : vector<8x256xf32>
    %38 = vector.extract_strided_slice %4 {offsets = [0, 48], sizes = [4, 256], strides = [1, 1]} : vector<4x306xf32> to vector<4x256xf32>
    %c7 = arith.constant 7 : index
    %c0_21 = arith.constant 0 : index
    %c0_22 = arith.constant 0 : index
    %39 = vector.load %arg2[%c7, %c0_21, %c0_22] : memref<9x8x4xf32, #tpu.memory_space<vmem>>, vector<1x8x4xf32>
    %40 = vector.shape_cast %39 : vector<1x8x4xf32> to vector<8x4xf32>
    %cst_23 = arith.constant dense<0.000000e+00> : vector<8x256xf32>
    %41 = tpu.matmul %40, %38, %cst_23 {dimension_numbers = #tpu.dot_dimension_numbers<[1], [0], [0], [1], [0, 0, 1, 1], [], []>} : vector<8x4xf32>, vector<4x256xf32>, vector<8x256xf32> -> vector<8x256xf32>
    %42 = arith.addf %37, %41 : vector<8x256xf32>
    %43 = arith.addf %26, %42 : vector<8x256xf32>
    %cst_24 = arith.constant 0.000000e+00 : f32
    %44 = vector.broadcast %cst_24 : f32 to vector<8x256xf32>
    %45 = vector.extract_strided_slice %4 {offsets = [0, 17], sizes = [4, 256], strides = [1, 1]} : vector<4x306xf32> to vector<4x256xf32>
    %c2 = arith.constant 2 : index
    %c0_25 = arith.constant 0 : index
    %c0_26 = arith.constant 0 : index
    %46 = vector.load %arg2[%c2, %c0_25, %c0_26] : memref<9x8x4xf32, #tpu.memory_space<vmem>>, vector<1x8x4xf32>
    %47 = vector.shape_cast %46 : vector<1x8x4xf32> to vector<8x4xf32>
    %cst_27 = arith.constant dense<0.000000e+00> : vector<8x256xf32>
    %48 = tpu.matmul %47, %45, %cst_27 {dimension_numbers = #tpu.dot_dimension_numbers<[1], [0], [0], [1], [0, 0, 1, 1], [], []>} : vector<8x4xf32>, vector<4x256xf32>, vector<8x256xf32> -> vector<8x256xf32>
    %49 = arith.addf %44, %48 : vector<8x256xf32>
    %50 = vector.extract_strided_slice %4 {offsets = [0, 33], sizes = [4, 256], strides = [1, 1]} : vector<4x306xf32> to vector<4x256xf32>
    %c5 = arith.constant 5 : index
    %c0_28 = arith.constant 0 : index
    %c0_29 = arith.constant 0 : index
    %51 = vector.load %arg2[%c5, %c0_28, %c0_29] : memref<9x8x4xf32, #tpu.memory_space<vmem>>, vector<1x8x4xf32>
    %52 = vector.shape_cast %51 : vector<1x8x4xf32> to vector<8x4xf32>
    %cst_30 = arith.constant dense<0.000000e+00> : vector<8x256xf32>
    %53 = tpu.matmul %52, %50, %cst_30 {dimension_numbers = #tpu.dot_dimension_numbers<[1], [0], [0], [1], [0, 0, 1, 1], [], []>} : vector<8x4xf32>, vector<4x256xf32>, vector<8x256xf32> -> vector<8x256xf32>
    %54 = arith.addf %49, %53 : vector<8x256xf32>
    %55 = vector.extract_strided_slice %4 {offsets = [0, 49], sizes = [4, 256], strides = [1, 1]} : vector<4x306xf32> to vector<4x256xf32>
    %c8 = arith.constant 8 : index
    %c0_31 = arith.constant 0 : index
    %c0_32 = arith.constant 0 : index
    %56 = vector.load %arg2[%c8, %c0_31, %c0_32] : memref<9x8x4xf32, #tpu.memory_space<vmem>>, vector<1x8x4xf32>
    %57 = vector.shape_cast %56 : vector<1x8x4xf32> to vector<8x4xf32>
    %cst_33 = arith.constant dense<0.000000e+00> : vector<8x256xf32>
    %58 = tpu.matmul %57, %55, %cst_33 {dimension_numbers = #tpu.dot_dimension_numbers<[1], [0], [0], [1], [0, 0, 1, 1], [], []>} : vector<8x4xf32>, vector<4x256xf32>, vector<8x256xf32> -> vector<8x256xf32>
    %59 = arith.addf %54, %58 : vector<8x256xf32>
    %60 = vector.extract_strided_slice %5 {offsets = [1, 0], sizes = [1, 256], strides = [1, 1]} : vector<2x256xf32> to vector<1x256xf32>
    %61 = vector.broadcast %60 : vector<1x256xf32> to vector<8x256xf32>
    %62 = arith.mulf %59, %61 : vector<8x256xf32>
    %63 = arith.addf %43, %62 : vector<8x256xf32>
    %c0_34 = arith.constant 0 : index
    %c0_35 = arith.constant 0 : index
    %64 = vector.load %arg3[%c0_34, %c0_35] : memref<8x1xf32, #tpu.memory_space<vmem>>, vector<8x1xf32>
    %65 = vector.broadcast %64 : vector<8x1xf32> to vector<8x256xf32>
    %66 = arith.addf %63, %65 : vector<8x256xf32>
    %cst_36 = arith.constant 0.000000e+00 : f32
    %67 = vector.broadcast %cst_36 : f32 to vector<8x256xf32>
    %68 = arith.cmpf oge, %66, %67 : vector<8x256xf32>
    %cst_37 = arith.constant 1.000000e-01 : f32
    %69 = vector.broadcast %cst_37 : f32 to vector<8x256xf32>
    %70 = arith.mulf %69, %66 : vector<8x256xf32>
    %71 = arith.select %68, %66, %70 : vector<8x256xi1>, vector<8x256xf32>
    %c0_38 = arith.constant 0 : index
    %c0_39 = arith.constant 0 : index
    %c0_40 = arith.constant 0 : index
    %72 = vector.load %arg6[%c0_38, %c0_39, %c0_40] : memref<1x8x256xf32, #tpu.memory_space<vmem>>, vector<1x8x256xf32>
    %73 = vector.shape_cast %72 : vector<1x8x256xf32> to vector<8x256xf32>
    %74 = vector.shape_cast %71 : vector<8x256xf32> to vector<1x8x256xf32>
    tpu.vector_store %arg6[%c0_38, %c0_39, %c0_40], %74 {strides = array<i32>} : memref<1x8x256xf32, #tpu.memory_space<vmem>>, vector<1x8x256xf32>,
    return
  }
  func.func @transform_0(%arg0: i32, %arg1: i32) -> (i32, i32, i32) {
    %c0_i32 = arith.constant 0 : i32
    %c0_i32_0 = arith.constant 0 : i32
    %c0_i32_1 = arith.constant 0 : i32
    %c0_i32_2 = arith.constant 0 : i32
    return %c0_i32, %c0_i32_0, %c0_i32_1 : i32, i32, i32
  }
  func.func @transform_1(%arg0: i32, %arg1: i32) -> (i32, i32) {
    %c0_i32 = arith.constant 0 : i32
    %c0_i32_0 = arith.constant 0 : i32
    %c0_i32_1 = arith.constant 0 : i32
    return %c0_i32, %c0_i32_0 : i32, i32
  }
  func.func @transform_2(%arg0: i32, %arg1: i32) -> (i32, i32) {
    %c0_i32 = arith.constant 0 : i32
    %c0_i32_0 = arith.constant 0 : i32
    return %c0_i32, %arg1 : i32, i32
  }
  func.func @transform_3(%arg0: i32, %arg1: i32) -> (i32, i32, i32) {
    %c0_i32 = arith.constant 0 : i32
    %c0_i32_0 = arith.constant 0 : i32
    %c0_i32_1 = arith.constant 0 : i32
    return %arg0, %c0_i32, %c0_i32_0 : i32, i32, i32
  }
  func.func @transform_4(%arg0: i32, %arg1: i32) -> (i32, i32, i32) {
    %c0_i32 = arith.constant 0 : i32
    %c0_i32_0 = arith.constant 0 : i32
    return %arg0, %c0_i32, %arg1 : i32, i32, i32
  }
}

</mosaic_0001>

<llo_original>
// kernel: tpu_custom_call.1
$region0: #{tpu_custom_call.1}
  #allocation0 [shape = 'u32[]', space=smem, size = 0x4, offset = 0x4, fixed_abs, tag = 'smem constant byte address 0x4 - core index']
  #allocation1 [shape = 'u32[144,128]{1,0:T(1,128)}', space=vmem, size = 0x12000, scoped, tag = 'internal scratch']
  %s0 = inlined_call_operand.vmem [shape: f32[9,8,4], index: 0, kind: input, shape index: {}]
  %s1 = inlined_call_operand.vmem [shape: f32[8,1], index: 1, kind: input, shape index: {}]
  %s2 = inlined_call_operand.vmem [shape: f32[2,256], index: 2, kind: input, shape index: {}]
  %s3 = inlined_call_operand.vmem [shape: f32[2,4,320], index: 3, kind: input, shape index: {}]
  %s4 = inlined_call_operand.hbm [shape: f32[2,8,256], index: 4, kind: output, shape index: {}]
  %s5 = sld [smem:[#allocation0]]
  $region49: #{tpu_custom_call.1} parent=0
    _
  %s7 = ssub.s32 1, %s5
  %s8 = scalar_select 0, %s7, %s5
  $region1: #{tpu_custom_call.1} parent=0
    #allocation2 [shape = 'u8[16384]{0}', space=vmem, size = 0x4000, scoped, tag = 'output window, operand 0']
    #allocation3 [shape = 's32[2]{0}', space=sflag, size = 0x8, scoped, tag = 'scoped memory for tpu_custom_call.1']
    %9 = vsyncpa [#allocation3], 0
    %s10 = scalar_lea.sflag [#allocation3], 1
    %11 = vsyncpa %s10, 0
    loop: start=0, step=1, limit=4
    $region2: #{tpu_custom_call.1} parent=1 // loop_pre_header
      _
    $region3: #{tpu_custom_call.1} parent=1 // loop_header
      %s13 = sphi 0, %s17
      %p14 = scmp.ge.s32.totalorder %s13, 4
      %s20 = sphi 0, %s32
      %s21 = sphi 0, %s28
      %s22 = sphi 0, %s20
      %s23 = sphi 0, %s21
      %s24 = sphi 0, %s22
      %s25 = sphi 0, %s23
      %s33 = sphi 0, %s33
      %s35 = sphi 0, %s33
      %s36 = sphi 0, %s35
      %s50 = sphi 0, %s36
      %s54 = sphi 0, %s54
      %s56 = sphi 0, %s54
      %s57 = sphi 0, %s56
      %s71 = sphi 0, %s57
      %s77 = sphi 0, %s79
      %s80 = sphi 0, %s77
      %s81 = sphi 0, %s80
      %s97 = sphi 0, %s81
      %s103 = sphi 0, %s105
      %s106 = sphi 0, %s103
      %s107 = sphi 0, %s106
      %s123 = sphi 0, %s107
      %s131 = sphi 0, %s133
      %s134 = sphi 0, %s131
      %s135 = sphi 0, %s134
      %s151 = sphi 0, %s135
    $region4: #{tpu_custom_call.1} parent=1 // loop_header_branch
      %16 = sbr.rel (%p14) target = $region8
    $region5: #{tpu_custom_call.1} parent=1 // loop_body
      %s18 = ssub.s32 %s13, 1
      %s19 = ssub.s32 %s13, 2
      %s26 = sadd.s32 1, %s21
      %p27 = scmp.ge.s32.totalorder %s26, 1
      %s28 = scalar_select %p27, 0, %s26
      %s29 = sadd.s32 1, %s20
      %s30 = scalar_select %p27, %s29, %s20
      %p31 = scmp.ge.s32.totalorder %s30, 2
      %s32 = scalar_select %p31, 0, %s30
      %s34 = sadd.s32 %s33, 1
      %p37 = scmp.eq.s32.totalorder %s13, 1
      %p38 = scmp.ne.s32.totalorder %s33, %s35
      %p39 = scmp.eq.s32.totalorder %s13, 0
      %p40 = por %p38, %p39
      %p41 = scmp.ne.s32.totalorder %s33, %s35
      %p42 = scmp.eq.s32.totalorder %s18, 1
      %p43 = por %p41, %p42
      %p44 = scmp.ne.s32.totalorder %s35, %s36
      %p45 = scmp.eq.s32.totalorder %s18, 0
      %p46 = por %p44, %p45
      %p47 = scmp.ne.s32.totalorder %s35, %s36
      %p48 = scmp.eq.s32.totalorder %s19, 1
      %p49 = por %p47, %p48
      %p51 = scmp.ne.s32.totalorder %s36, %s50
      %p52 = scmp.eq.s32.totalorder %s19, 0
      %p53 = por %p51, %p52
      %s55 = sadd.s32 %s54, 1
      %p58 = scmp.eq.s32.totalorder %s13, 1
      %p59 = scmp.ne.s32.totalorder %s54, %s56
      %p60 = scmp.eq.s32.totalorder %s13, 0
      %p61 = por %p59, %p60
      %p62 = scmp.ne.s32.totalorder %s54, %s56
      %p63 = scmp.eq.s32.totalorder %s18, 1
      %p64 = por %p62, %p63
      %p65 = scmp.ne.s32.totalorder %s56, %s57
      %p66 = scmp.eq.s32.totalorder %s18, 0
      %p67 = por %p65, %p66
      %p68 = scmp.ne.s32.totalorder %s56, %s57
      %p69 = scmp.eq.s32.totalorder %s19, 1
      %p70 = por %p68, %p69
      %p72 = scmp.ne.s32.totalorder %s57, %s71
      %p73 = scmp.eq.s32.totalorder %s19, 0
      %p74 = por %p72, %p73
      %s75 = ssub.s32 %s21, %s28
      %p76 = scmp.eq.s32.totalorder %s75, 0
      %s78 = sadd.s32 %s77, 1
      %s79 = scalar_select %p76, %s77, %s78
      %p82 = pneg %p76
      %p83 = scmp.eq.s32.totalorder %s13, 1
      %p84 = por %p82, %p83
      %p85 = scmp.ne.s32.totalorder %s77, %s80
      %p86 = scmp.eq.s32.totalorder %s13, 0
      %p87 = por %p85, %p86
      %p88 = scmp.ne.s32.totalorder %s77, %s80
      %p89 = scmp.eq.s32.totalorder %s18, 1
      %p90 = por %p88, %p89
      %p91 = scmp.ne.s32.totalorder %s80, %s81
      %p92 = scmp.eq.s32.totalorder %s18, 0
      %p93 = por %p91, %p92
      %p94 = scmp.ne.s32.totalorder %s80, %s81
      %p95 = scmp.eq.s32.totalorder %s19, 1
      %p96 = por %p94, %p95
      %p98 = scmp.ne.s32.totalorder %s81, %s97
      %p99 = scmp.eq.s32.totalorder %s19, 0
      %p100 = por %p98, %p99
      %s101 = ssub.s32 %s20, %s32
      %p102 = scmp.eq.s32.totalorder %s101, 0
      %s104 = sadd.s32 %s103, 1
      %s105 = scalar_select %p102, %s103, %s104
      %p108 = pneg %p102
      %p109 = scmp.eq.s32.totalorder %s13, 1
      %p110 = por %p108, %p109
      %p111 = scmp.ne.s32.totalorder %s103, %s106
      %p112 = scmp.eq.s32.totalorder %s13, 0
      %p113 = por %p111, %p112
      %p114 = scmp.ne.s32.totalorder %s103, %s106
      %p115 = scmp.eq.s32.totalorder %s18, 1
      %p116 = por %p114, %p115
      %p117 = scmp.ne.s32.totalorder %s106, %s107
      %p118 = scmp.eq.s32.totalorder %s18, 0
      %p119 = por %p117, %p118
      %p120 = scmp.ne.s32.totalorder %s106, %s107
      %p121 = scmp.eq.s32.totalorder %s19, 1
      %p122 = por %p120, %p121
      %p124 = scmp.ne.s32.totalorder %s107, %s123
      %p125 = scmp.eq.s32.totalorder %s19, 0
      %p126 = por %p124, %p125
      %s127 = ssub.s32 %s20, %s32
      %s128 = ssub.s32 %s21, %s28
      %s129 = sor.u32 %s127, %s128
      %p130 = scmp.eq.s32.totalorder %s129, 0
      %s132 = sadd.s32 %s131, 1
      %s133 = scalar_select %p130, %s131, %s132
      %p136 = pneg %p130
      %p137 = scmp.eq.s32.totalorder %s13, 1
      %p138 = por %p136, %p137
      %p139 = scmp.ne.s32.totalorder %s131, %s134
      %p140 = scmp.eq.s32.totalorder %s13, 0
      %p141 = por %p139, %p140
      %p142 = scmp.ne.s32.totalorder %s131, %s134
      %p143 = scmp.eq.s32.totalorder %s18, 1
      %p144 = por %p142, %p143
      %p145 = scmp.ne.s32.totalorder %s134, %s135
      %p146 = scmp.eq.s32.totalorder %s18, 0
      %p147 = por %p145, %p146
      %p148 = scmp.ne.s32.totalorder %s134, %s135
      %p149 = scmp.eq.s32.totalorder %s19, 1
      %p150 = por %p148, %p149
      %p152 = scmp.ne.s32.totalorder %s135, %s151
      %p153 = scmp.eq.s32.totalorder %s19, 0
      %p154 = por %p152, %p153
      %p155 = scmp.le.s32.totalorder 1, %s13
      %p156 = scmp.lt.s32.totalorder %s13, 3
      %p157 = pnand %p155, %p156
      %p158 = pneg %p157
      // Predicated region
      $region9: #{tpu_custom_call.1} parent=5 // pred_check
        _
      $region10: #{tpu_custom_call.1} parent=5 // pred_check_branch
        %160 = sbr.rel (%p157) target = $region12
      $region11: #{tpu_custom_call.1} parent=5 // pred_region
        %s161 = ssub.s32 %s13, 1
        // Predicated region
        $region13: #{tpu_custom_call.1} parent=11 // pred_check
          %p162 = pneg %p46
        $region14: #{tpu_custom_call.1} parent=11 // pred_check_branch
          %164 = sbr.rel (%p162) target = $region16
        $region15: #{tpu_custom_call.1} parent=11 // pred_region
          _
        $region16: #{tpu_custom_call.1} parent=11 // pred_fallthru
          _
        // Predicated region
        $region17: #{tpu_custom_call.1} parent=11 // pred_check
          %p165 = pneg %p67
        $region18: #{tpu_custom_call.1} parent=11 // pred_check_branch
          %167 = sbr.rel (%p165) target = $region20
        $region19: #{tpu_custom_call.1} parent=11 // pred_region
          _
        $region20: #{tpu_custom_call.1} parent=11 // pred_fallthru
          _
        // Predicated region
        $region21: #{tpu_custom_call.1} parent=11 // pred_check
          %p168 = pneg %p93
        $region22: #{tpu_custom_call.1} parent=11 // pred_check_branch
          %170 = sbr.rel (%p168) target = $region24
        $region23: #{tpu_custom_call.1} parent=11 // pred_region
          %s171 = smul.u32 2, %s23
          %p172 = scmp.lt.s32.totalorder %s171, 1
          %s173 = scalar_select %p172, %s171, 1
          %s174 = smul.addr %s173, 2
          %s175 = scalar_lea.vmem %s2, %s174
          %s176 = smul.u32 2, %s23
        $region24: #{tpu_custom_call.1} parent=11 // pred_fallthru
          _
      $region12: #{tpu_custom_call.1} parent=5 // pred_fallthru
        _
      %p177 = scmp.lt.s32.totalorder %s13, 2
      // Predicated region
      $region25: #{tpu_custom_call.1} parent=5 // pred_check
        %p178 = pneg %p177
      $region26: #{tpu_custom_call.1} parent=5 // pred_check_branch
        %180 = sbr.rel (%p178) target = $region28
      $region27: #{tpu_custom_call.1} parent=5 // pred_region
        // Predicated region
        $region29: #{tpu_custom_call.1} parent=27 // pred_check
          %p181 = pneg %p113
        $region30: #{tpu_custom_call.1} parent=27 // pred_check_branch
          %183 = sbr.rel (%p181) target = $region32
        $region31: #{tpu_custom_call.1} parent=27 // pred_region
          %p184 = scmp.lt.s32.totalorder %s20, 1
          %s185 = scalar_select %p184, %s20, 1
          %s186 = smul.addr %s185, 3
          %s187 = smul.addr %s186, 4
          %s188 = scalar_lea.vmem %s3, %s187
        $region32: #{tpu_custom_call.1} parent=27 // pred_fallthru
          _
      $region28: #{tpu_custom_call.1} parent=5 // pred_fallthru
        _
      %p189 = scmp.le.s32.totalorder 1, %s13
      %p190 = scmp.lt.s32.totalorder %s13, 3
      %p191 = pnand %p189, %p190
      %p192 = pneg %p191
      // Predicated region
      $region33: #{tpu_custom_call.1} parent=5 // pred_check
        _
      $region34: #{tpu_custom_call.1} parent=5 // pred_check_branch
        %194 = sbr.rel (%p191) target = $region36
      $region35: #{tpu_custom_call.1} parent=5 // pred_region
        %s195 = ssub.s32 %s13, 1
        %p196 = pneg %p46
        %p197 = pneg %p43
        %p198 = pneg %p67
        %p199 = pneg %p64
        %s200 = smul.u32 2, %s23
        %p201 = scmp.lt.s32.totalorder %s200, 1
        %s202 = scalar_select %p201, %s200, 1
        %s203 = smul.addr %s202, 2
        %s204 = scalar_lea.vmem %s2, %s203
        %p205 = pneg %p93
        %p206 = pneg %p90
        %p207 = scmp.lt.s32.totalorder %s22, 1
        %s208 = scalar_select %p207, %s22, 1
        %s209 = smul.addr %s208, 3
        %s210 = smul.addr %s209, 4
        %s211 = scalar_lea.vmem %s3, %s210
        %p212 = pneg %p119
        %p213 = pneg %p116
        %p214 = pneg %p147
        %p215 = pneg %p144
        %s216 = sand.u32 %s134, 1
        %s217 = scalar_lea.sflag [#allocation3], %s216
        %s218 = sand.u32 %s134, 1
        %s219 = smul.addr %s218, 16
        %s220 = scalar_lea.vmem [#allocation2], %s219
        %s221 = smul.u32 2, %s23
        %p222 = scmp.lt.s32.totalorder %s221, 1
        %s223 = scalar_select %p222, %s221, 1
        %s224 = smul.addr %s223, 2
        %s225 = scalar_lea.vmem %s2, %s224
        %s226 = smul.u32 2, %s23
        %p227 = scmp.lt.s32.totalorder %s22, 1
        %s228 = scalar_select %p227, %s22, 1
        %s229 = smul.addr %s228, 3
        %s230 = smul.addr %s229, 4
        %s231 = scalar_lea.vmem %s3, %s230
        %s232 = smul.u32 2, %s23
        %s233 = smul.u32 %s23, 256
        %s234 = sshra.s32 %s233, 7
        %s235 = sand.u32 %s233, 127
        %s236 = smul.addr %s234, 4
        %s237 = scalar_lea.vmem %s231, %s236
        %v238 = vld [vmem:[%s237] sm:$0xff]
        %v239 = vld [vmem:[%s237 + $0x8] sm:$0xf]
        %v240 = vld [vmem:[%s225] sm:$0xf]
        %v241 = vld [vmem:[%s0] sm:$0xff]
        %s242 = scalar_lea.vmem %s0, 24
        %v243 = vld [vmem:[%s242] sm:$0xff]
        %v246 = vcombine.high %v238, %v238
        %247 = vrot.lane.b32.xlu0 %v238, 97
        %v248 = vpop.permute.xlu0 %247
        %249 = vrot.lane.b32.xlu0 %v246, 97
        %v250 = vpop.permute.xlu0 %249
        %251 = vrot.lane.b32.xlu0 %v239, 97
        %v252 = vpop.permute.xlu0 %251
        %vm253 = vcmask 793600
        %v254 = vsel %vm253, %v248, %v250
        %v255 = vsel %vm253, %v250, %v252
        %vm256 = vcmask 31744
        %v258 = vsel %vm256, %v243, 0
        %vm260 = vcmask 1043456
        %v261 = vsel %vm260, %v254, 0
        %v263 = vsel %vm260, %v255, 0
        %265 = vmatprep.subr.mxu0 %v263
        %266 = vmatpush1.msra.mxu0 %v261
        %267 = vmatprep.subr.mxu0 0.0
        %268 = vmatpush1.msra.mxu0 0.0
        %269 = vmatprep.subr.mxu0 0.0
        %270 = vmatpush1.msra.mxu0 0.0
        %271 = vmatprep.subr.mxu0 0.0
        %272 = vmatpush1.msra.mxu0 0.0
        %273 = vmatprep.subr.mxu0 0.0
        %274 = vmatpush1.msra.mxu0 0.0
        %275 = vmatprep.subr.mxu0 0.0
        %276 = vmatpush1.msra.mxu0 0.0
        %277 = vmatprep.subr.mxu0 0.0
        %278 = vmatpush1.msra.mxu0 0.0
        %279 = vmatprep.subr.mxu0 0.0
        %280 = vmatpush1.msra.mxu0 0.0
        %281 = vmatprep.subr.mxu0 0.0
        %282 = vmatpush1.msra.mxu0 0.0
        %283 = vmatprep.subr.mxu0 0.0
        %284 = vmatpush1.msra.mxu0 0.0
        %285 = vmatprep.subr.mxu0 0.0
        %286 = vmatpush1.msra.mxu0 0.0
        %287 = vmatprep.subr.mxu0 0.0
        %288 = vmatpush1.msra.mxu0 0.0
        %289 = vmatprep.subr.mxu0 0.0
        %290 = vmatpush1.msra.mxu0 0.0
        %291 = vmatprep.subr.mxu0 0.0
        %292 = vmatpush1.msra.mxu0 0.0
        %293 = vmatprep.subr.mxu0 0.0
        %294 = vmatpush1.msra.mxu0 0.0
        %295 = vmatprep.subr.mxu0 0.0
        %296 = vmatpush1.msra.mxu0 0.0
        %297 = vmatprep.subr.mxu0 0.0
        %298 = vmatpush1.msra.mxu0 0.0
        %299 = vmatprep.subr.mxu0 0.0
        %300 = vmatpush1.msra.mxu0 0.0
        %301 = vmatprep.subr.mxu0 0.0
        %302 = vmatpush1.msra.mxu0 0.0
        %303 = vmatprep.subr.mxu0 0.0
        %304 = vmatpush1.msra.mxu0 0.0
        %305 = vmatprep.subr.mxu0 0.0
        %306 = vmatpush1.msra.mxu0 0.0
        %307 = vmatprep.subr.mxu0 0.0
        %308 = vmatpush1.msra.mxu0 0.0
        %309 = vmatprep.subr.mxu0 0.0
        %310 = vmatpush1.msra.mxu0 0.0
        %311 = vmatprep.subr.mxu0 0.0
        %312 = vmatpush1.msra.mxu0 0.0
        %313 = vmatprep.subr.mxu0 0.0
        %314 = vmatpush1.msra.mxu0 0.0
        %315 = vmatprep.subr.mxu0 0.0
        %316 = vmatpush1.msra.mxu0 0.0
        %317 = vmatprep.subr.mxu0 0.0
        %318 = vmatpush1.msra.mxu0 0.0
        %319 = vmatprep.subr.mxu0 0.0
        %320 = vmatpush1.msra.mxu0 0.0
        %321 = vmatprep.subr.mxu0 0.0
        %322 = vmatpush1.msra.mxu0 0.0
        %323 = vmatprep.subr.mxu0 0.0
        %324 = vmatpush1.msra.mxu0 0.0
        %325 = vmatprep.subr.mxu0 0.0
        %326 = vmatpush1.msra.mxu0 0.0
        %327 = vmatprep.subr.mxu0 0.0
        %328 = vmatpush1.msra.mxu0 0.0
        %329 = vmatprep.mubr.f32.mxu0 0.0
        %330 = vmatmul.mubr.f32.gmra.mrb[0].mxu0 %v258
        %v331 = vpop.f32.mrb[0].mxu0
        %v332 = vadd.f32 0.0, %v331
        %v333 = vpop.f32.mrb[0].mxu0
        %v334 = vadd.f32 0.0, %v333
        %335 = vdwg.mxu0
        %336 = vrot.lane.b32.xlu0 %v238, 113
        %v337 = vpop.permute.xlu0 %336
        %338 = vrot.lane.b32.xlu0 %v246, 113
        %v339 = vpop.permute.xlu0 %338
        %340 = vrot.lane.b32.xlu0 %v239, 113
        %v341 = vpop.permute.xlu0 %340
        %vm342 = vcmask 924672
        %v343 = vsel %vm342, %v337, %v339
        %v344 = vsel %vm342, %v339, %v341
        %v346 = vsel %vm256, %v241, 0
        %v348 = vsel %vm260, %v343, 0
        %v350 = vsel %vm260, %v344, 0
        %352 = vmatprep.subr.mxu0 %v350
        %353 = vmatpush1.msra.mxu0 %v348
        %354 = vmatprep.subr.mxu0 0.0
        %355 = vmatpush1.msra.mxu0 0.0
        %356 = vmatprep.subr.mxu0 0.0
        %357 = vmatpush1.msra.mxu0 0.0
        %358 = vmatprep.subr.mxu0 0.0
        %359 = vmatpush1.msra.mxu0 0.0
        %360 = vmatprep.subr.mxu0 0.0
        %361 = vmatpush1.msra.mxu0 0.0
        %362 = vmatprep.subr.mxu0 0.0
        %363 = vmatpush1.msra.mxu0 0.0
        %364 = vmatprep.subr.mxu0 0.0
        %365 = vmatpush1.msra.mxu0 0.0
        %366 = vmatprep.subr.mxu0 0.0
        %367 = vmatpush1.msra.mxu0 0.0
        %368 = vmatprep.subr.mxu0 0.0
        %369 = vmatpush1.msra.mxu0 0.0
        %370 = vmatprep.subr.mxu0 0.0
        %371 = vmatpush1.msra.mxu0 0.0
        %372 = vmatprep.subr.mxu0 0.0
        %373 = vmatpush1.msra.mxu0 0.0
        %374 = vmatprep.subr.mxu0 0.0
        %375 = vmatpush1.msra.mxu0 0.0
        %376 = vmatprep.subr.mxu0 0.0
        %377 = vmatpush1.msra.mxu0 0.0
        %378 = vmatprep.subr.mxu0 0.0
        %379 = vmatpush1.msra.mxu0 0.0
        %380 = vmatprep.subr.mxu0 0.0
        %381 = vmatpush1.msra.mxu0 0.0
        %382 = vmatprep.subr.mxu0 0.0
        %383 = vmatpush1.msra.mxu0 0.0
        %384 = vmatprep.subr.mxu0 0.0
        %385 = vmatpush1.msra.mxu0 0.0
        %386 = vmatprep.subr.mxu0 0.0
        %387 = vmatpush1.msra.mxu0 0.0
        %388 = vmatprep.subr.mxu0 0.0
        %389 = vmatpush1.msra.mxu0 0.0
        %390 = vmatprep.subr.mxu0 0.0
        %391 = vmatpush1.msra.mxu0 0.0
        %392 = vmatprep.subr.mxu0 0.0
        %393 = vmatpush1.msra.mxu0 0.0
        %394 = vmatprep.subr.mxu0 0.0
        %395 = vmatpush1.msra.mxu0 0.0
        %396 = vmatprep.subr.mxu0 0.0
        %397 = vmatpush1.msra.mxu0 0.0
        %398 = vmatprep.subr.mxu0 0.0
        %399 = vmatpush1.msra.mxu0 0.0
        %400 = vmatprep.subr.mxu0 0.0
        %401 = vmatpush1.msra.mxu0 0.0
        %402 = vmatprep.subr.mxu0 0.0
        %403 = vmatpush1.msra.mxu0 0.0
        %404 = vmatprep.subr.mxu0 0.0
        %405 = vmatpush1.msra.mxu0 0.0
        %406 = vmatprep.subr.mxu0 0.0
        %407 = vmatpush1.msra.mxu0 0.0
        %408 = vmatprep.subr.mxu0 0.0
        %409 = vmatpush1.msra.mxu0 0.0
        %410 = vmatprep.subr.mxu0 0.0
        %411 = vmatpush1.msra.mxu0 0.0
        %412 = vmatprep.subr.mxu0 0.0
        %413 = vmatpush1.msra.mxu0 0.0
        %414 = vmatprep.subr.mxu0 0.0
        %415 = vmatpush1.msra.mxu0 0.0
        %416 = vmatprep.mubr.f32.mxu0 0.0
        %417 = vmatmul.mubr.f32.gmra.mrb[0].mxu0 %v346
        %v418 = vpop.f32.mrb[0].mxu0
        %v419 = vadd.f32 %v332, %v418
        %v420 = vpop.f32.mrb[0].mxu0
        %v421 = vadd.f32 %v334, %v420
        %422 = vdwg.mxu0
        %s423 = scalar_lea.vmem %s0, 48
        %v424 = vld [vmem:[%s423] sm:$0xff]
        %425 = vrot.lane.b32.xlu0 %v238, 81
        %v426 = vpop.permute.xlu0 %425
        %427 = vrot.lane.b32.xlu0 %v246, 81
        %v428 = vpop.permute.xlu0 %427
        %429 = vrot.lane.b32.xlu0 %v239, 81
        %v430 = vpop.permute.xlu0 %429
        %vm431 = vcmask 662528
        %v432 = vsel %vm431, %v426, %v428
        %v433 = vsel %vm431, %v428, %v430
        %v435 = vsel %vm256, %v424, 0
        %v437 = vsel %vm260, %v432, 0
        %v439 = vsel %vm260, %v433, 0
        %441 = vmatprep.subr.mxu0 %v439
        %442 = vmatpush1.msra.mxu0 %v437
        %443 = vmatprep.subr.mxu0 0.0
        %444 = vmatpush1.msra.mxu0 0.0
        %445 = vmatprep.subr.mxu0 0.0
        %446 = vmatpush1.msra.mxu0 0.0
        %447 = vmatprep.subr.mxu0 0.0
        %448 = vmatpush1.msra.mxu0 0.0
        %449 = vmatprep.subr.mxu0 0.0
        %450 = vmatpush1.msra.mxu0 0.0
        %451 = vmatprep.subr.mxu0 0.0
        %452 = vmatpush1.msra.mxu0 0.0
        %453 = vmatprep.subr.mxu0 0.0
        %454 = vmatpush1.msra.mxu0 0.0
        %455 = vmatprep.subr.mxu0 0.0
        %456 = vmatpush1.msra.mxu0 0.0
        %457 = vmatprep.subr.mxu0 0.0
        %458 = vmatpush1.msra.mxu0 0.0
        %459 = vmatprep.subr.mxu0 0.0
        %460 = vmatpush1.msra.mxu0 0.0
        %461 = vmatprep.subr.mxu0 0.0
        %462 = vmatpush1.msra.mxu0 0.0
        %463 = vmatprep.subr.mxu0 0.0
        %464 = vmatpush1.msra.mxu0 0.0
        %465 = vmatprep.subr.mxu0 0.0
        %466 = vmatpush1.msra.mxu0 0.0
        %467 = vmatprep.subr.mxu0 0.0
        %468 = vmatpush1.msra.mxu0 0.0
        %469 = vmatprep.subr.mxu0 0.0
        %470 = vmatpush1.msra.mxu0 0.0
        %471 = vmatprep.subr.mxu0 0.0
        %472 = vmatpush1.msra.mxu0 0.0
        %473 = vmatprep.subr.mxu0 0.0
        %474 = vmatpush1.msra.mxu0 0.0
        %475 = vmatprep.subr.mxu0 0.0
        %476 = vmatpush1.msra.mxu0 0.0
        %477 = vmatprep.subr.mxu0 0.0
        %478 = vmatpush1.msra.mxu0 0.0
        %479 = vmatprep.subr.mxu0 0.0
        %480 = vmatpush1.msra.mxu0 0.0
        %481 = vmatprep.subr.mxu0 0.0
        %482 = vmatpush1.msra.mxu0 0.0
        %483 = vmatprep.subr.mxu0 0.0
        %484 = vmatpush1.msra.mxu0 0.0
        %485 = vmatprep.subr.mxu0 0.0
        %486 = vmatpush1.msra.mxu0 0.0
        %487 = vmatprep.subr.mxu0 0.0
        %488 = vmatpush1.msra.mxu0 0.0
        %489 = vmatprep.subr.mxu0 0.0
        %490 = vmatpush1.msra.mxu0 0.0
        %491 = vmatprep.subr.mxu0 0.0
        %492 = vmatpush1.msra.mxu0 0.0
        %493 = vmatprep.subr.mxu0 0.0
        %494 = vmatpush1.msra.mxu0 0.0
        %495 = vmatprep.subr.mxu0 0.0
        %496 = vmatpush1.msra.mxu0 0.0
        %497 = vmatprep.subr.mxu0 0.0
        %498 = vmatpush1.msra.mxu0 0.0
        %499 = vmatprep.subr.mxu0 0.0
        %500 = vmatpush1.msra.mxu0 0.0
        %501 = vmatprep.subr.mxu0 0.0
        %502 = vmatpush1.msra.mxu0 0.0
        %503 = vmatprep.subr.mxu0 0.0
        %504 = vmatpush1.msra.mxu0 0.0
        %505 = vmatprep.mubr.f32.mxu0 0.0
        %506 = vmatmul.mubr.f32.gmra.mrb[0].mxu0 %v435
        %v507 = vpop.f32.mrb[0].mxu0
        %v508 = vadd.f32 0.0, %v507
        %v509 = vpop.f32.mrb[0].mxu0
        %v510 = vadd.f32 0.0, %v509
        %511 = vdwg.mxu0
        %v512 = vadd.f32 %v419, %v508
        %v513 = vadd.f32 %v421, %v510
        %v515 = vlaneseq
        %v516 = vshrl.u32 %v515, 7
        %v517 = vsub.s32 0, %v516
        %v518 = vrot.slane %v240, %v517
        %v519 = vlaneseq
        %v520 = vshrl.u32 %v519, 7
        %v521 = vsub.s32 2, %v520
        %v522 = vrot.slane %v240, %v521
        %v525 = vlaneseq
        %v526 = vshrl.u32 %v525, 7
        %v527 = vsub.s32 0, %v526
        %v528 = vrot.slane %v518, %v527
        %v529 = vlaneseq
        %v530 = vshrl.u32 %v529, 7
        %v531 = vsub.s32 0, %v530
        %v532 = vrot.slane %v522, %v531
        %v533 = vmul.f32 %v512, %v528
        %v534 = vmul.f32 %v513, %v532
        %v535 = vadd.f32 %v533, 0.0
        %v536 = vadd.f32 %v534, 0.0
        %s537 = scalar_lea.vmem %s0, 8
        %v538 = vld [vmem:[%s537] sm:$0xff]
        %s539 = scalar_lea.vmem %s0, 32
        %v540 = vld [vmem:[%s539] sm:$0xff]
        %541 = vrot.lane.b32.xlu0 %v238, 96
        %v542 = vpop.permute.xlu0 %541
        %543 = vrot.lane.b32.xlu0 %v246, 96
        %v544 = vpop.permute.xlu0 %543
        %545 = vrot.lane.b32.xlu0 %v239, 96
        %v546 = vpop.permute.xlu0 %545
        %vm547 = vcmask 785408
        %v548 = vsel %vm547, %v542, %v544
        %v549 = vsel %vm547, %v544, %v546
        %v551 = vsel %vm256, %v540, 0
        %v553 = vsel %vm260, %v548, 0
        %v555 = vsel %vm260, %v549, 0
        %557 = vmatprep.subr.mxu0 %v555
        %558 = vmatpush1.msra.mxu0 %v553
        %559 = vmatprep.subr.mxu0 0.0
        %560 = vmatpush1.msra.mxu0 0.0
        %561 = vmatprep.subr.mxu0 0.0
        %562 = vmatpush1.msra.mxu0 0.0
        %563 = vmatprep.subr.mxu0 0.0
        %564 = vmatpush1.msra.mxu0 0.0
        %565 = vmatprep.subr.mxu0 0.0
        %566 = vmatpush1.msra.mxu0 0.0
        %567 = vmatprep.subr.mxu0 0.0
        %568 = vmatpush1.msra.mxu0 0.0
        %569 = vmatprep.subr.mxu0 0.0
        %570 = vmatpush1.msra.mxu0 0.0
        %571 = vmatprep.subr.mxu0 0.0
        %572 = vmatpush1.msra.mxu0 0.0
        %573 = vmatprep.subr.mxu0 0.0
        %574 = vmatpush1.msra.mxu0 0.0
        %575 = vmatprep.subr.mxu0 0.0
        %576 = vmatpush1.msra.mxu0 0.0
        %577 = vmatprep.subr.mxu0 0.0
        %578 = vmatpush1.msra.mxu0 0.0
        %579 = vmatprep.subr.mxu0 0.0
        %580 = vmatpush1.msra.mxu0 0.0
        %581 = vmatprep.subr.mxu0 0.0
        %582 = vmatpush1.msra.mxu0 0.0
        %583 = vmatprep.subr.mxu0 0.0
        %584 = vmatpush1.msra.mxu0 0.0
        %585 = vmatprep.subr.mxu0 0.0
        %586 = vmatpush1.msra.mxu0 0.0
        %587 = vmatprep.subr.mxu0 0.0
        %588 = vmatpush1.msra.mxu0 0.0
        %589 = vmatprep.subr.mxu0 0.0
        %590 = vmatpush1.msra.mxu0 0.0
        %591 = vmatprep.subr.mxu0 0.0
        %592 = vmatpush1.msra.mxu0 0.0
        %593 = vmatprep.subr.mxu0 0.0
        %594 = vmatpush1.msra.mxu0 0.0
        %595 = vmatprep.subr.mxu0 0.0
        %596 = vmatpush1.msra.mxu0 0.0
        %597 = vmatprep.subr.mxu0 0.0
        %598 = vmatpush1.msra.mxu0 0.0
        %599 = vmatprep.subr.mxu0 0.0
        %600 = vmatpush1.msra.mxu0 0.0
        %601 = vmatprep.subr.mxu0 0.0
        %602 = vmatpush1.msra.mxu0 0.0
        %603 = vmatprep.subr.mxu0 0.0
        %604 = vmatpush1.msra.mxu0 0.0
        %605 = vmatprep.subr.mxu0 0.0
        %606 = vmatpush1.msra.mxu0 0.0
        %607 = vmatprep.subr.mxu0 0.0
        %608 = vmatpush1.msra.mxu0 0.0
        %609 = vmatprep.subr.mxu0 0.0
        %610 = vmatpush1.msra.mxu0 0.0
        %611 = vmatprep.subr.mxu0 0.0
        %612 = vmatpush1.msra.mxu0 0.0
        %613 = vmatprep.subr.mxu0 0.0
        %614 = vmatpush1.msra.mxu0 0.0
        %615 = vmatprep.subr.mxu0 0.0
        %616 = vmatpush1.msra.mxu0 0.0
        %617 = vmatprep.subr.mxu0 0.0
        %618 = vmatpush1.msra.mxu0 0.0
        %619 = vmatprep.subr.mxu0 0.0
        %620 = vmatpush1.msra.mxu0 0.0
        %621 = vmatprep.mubr.f32.mxu0 0.0
        %622 = vmatmul.mubr.f32.gmra.mrb[0].mxu0 %v551
        %v623 = vpop.f32.mrb[0].mxu0
        %v624 = vadd.f32 0.0, %v623
        %v625 = vpop.f32.mrb[0].mxu0
        %v626 = vadd.f32 0.0, %v625
        %627 = vdwg.mxu0
        %628 = vrot.lane.b32.xlu0 %v238, 112
        %v629 = vpop.permute.xlu0 %628
        %630 = vrot.lane.b32.xlu0 %v246, 112
        %v631 = vpop.permute.xlu0 %630
        %632 = vrot.lane.b32.xlu0 %v239, 112
        %v633 = vpop.permute.xlu0 %632
        %vm634 = vcmask 916480
        %v635 = vsel %vm634, %v629, %v631
        %v636 = vsel %vm634, %v631, %v633
        %v638 = vsel %vm256, %v538, 0
        %v640 = vsel %vm260, %v635, 0
        %v642 = vsel %vm260, %v636, 0
        %644 = vmatprep.subr.mxu0 %v642
        %645 = vmatpush1.msra.mxu0 %v640
        %646 = vmatprep.subr.mxu0 0.0
        %647 = vmatpush1.msra.mxu0 0.0
        %648 = vmatprep.subr.mxu0 0.0
        %649 = vmatpush1.msra.mxu0 0.0
        %650 = vmatprep.subr.mxu0 0.0
        %651 = vmatpush1.msra.mxu0 0.0
        %652 = vmatprep.subr.mxu0 0.0
        %653 = vmatpush1.msra.mxu0 0.0
        %654 = vmatprep.subr.mxu0 0.0
        %655 = vmatpush1.msra.mxu0 0.0
        %656 = vmatprep.subr.mxu0 0.0
        %657 = vmatpush1.msra.mxu0 0.0
        %658 = vmatprep.subr.mxu0 0.0
        %659 = vmatpush1.msra.mxu0 0.0
        %660 = vmatprep.subr.mxu0 0.0
        %661 = vmatpush1.msra.mxu0 0.0
        %662 = vmatprep.subr.mxu0 0.0
        %663 = vmatpush1.msra.mxu0 0.0
        %664 = vmatprep.subr.mxu0 0.0
        %665 = vmatpush1.msra.mxu0 0.0
        %666 = vmatprep.subr.mxu0 0.0
        %667 = vmatpush1.msra.mxu0 0.0
        %668 = vmatprep.subr.mxu0 0.0
        %669 = vmatpush1.msra.mxu0 0.0
        %670 = vmatprep.subr.mxu0 0.0
        %671 = vmatpush1.msra.mxu0 0.0
        %672 = vmatprep.subr.mxu0 0.0
        %673 = vmatpush1.msra.mxu0 0.0
        %674 = vmatprep.subr.mxu0 0.0
        %675 = vmatpush1.msra.mxu0 0.0
        %676 = vmatprep.subr.mxu0 0.0
        %677 = vmatpush1.msra.mxu0 0.0
        %678 = vmatprep.subr.mxu0 0.0
        %679 = vmatpush1.msra.mxu0 0.0
        %680 = vmatprep.subr.mxu0 0.0
        %681 = vmatpush1.msra.mxu0 0.0
        %682 = vmatprep.subr.mxu0 0.0
        %683 = vmatpush1.msra.mxu0 0.0
        %684 = vmatprep.subr.mxu0 0.0
        %685 = vmatpush1.msra.mxu0 0.0
        %686 = vmatprep.subr.mxu0 0.0
        %687 = vmatpush1.msra.mxu0 0.0
        %688 = vmatprep.subr.mxu0 0.0
        %689 = vmatpush1.msra.mxu0 0.0
        %690 = vmatprep.subr.mxu0 0.0
        %691 = vmatpush1.msra.mxu0 0.0
        %692 = vmatprep.subr.mxu0 0.0
        %693 = vmatpush1.msra.mxu0 0.0
        %694 = vmatprep.subr.mxu0 0.0
        %695 = vmatpush1.msra.mxu0 0.0
        %696 = vmatprep.subr.mxu0 0.0
        %697 = vmatpush1.msra.mxu0 0.0
        %698 = vmatprep.subr.mxu0 0.0
        %699 = vmatpush1.msra.mxu0 0.0
        %700 = vmatprep.subr.mxu0 0.0
        %701 = vmatpush1.msra.mxu0 0.0
        %702 = vmatprep.subr.mxu0 0.0
        %703 = vmatpush1.msra.mxu0 0.0
        %704 = vmatprep.subr.mxu0 0.0
        %705 = vmatpush1.msra.mxu0 0.0
        %706 = vmatprep.subr.mxu0 0.0
        %707 = vmatpush1.msra.mxu0 0.0
        %708 = vmatprep.mubr.f32.mxu0 0.0
        %709 = vmatmul.mubr.f32.gmra.mrb[0].mxu0 %v638
        %v710 = vpop.f32.mrb[0].mxu0
        %v711 = vadd.f32 %v624, %v710
        %v712 = vpop.f32.mrb[0].mxu0
        %v713 = vadd.f32 %v626, %v712
        %714 = vdwg.mxu0
        %s715 = scalar_lea.vmem %s0, 56
        %v716 = vld [vmem:[%s715] sm:$0xff]
        %717 = vrot.lane.b32.xlu0 %v238, 80
        %v718 = vpop.permute.xlu0 %717
        %719 = vrot.lane.b32.xlu0 %v246, 80
        %v720 = vpop.permute.xlu0 %719
        %721 = vrot.lane.b32.xlu0 %v239, 80
        %v722 = vpop.permute.xlu0 %721
        %vm723 = vcmask 654336
        %v724 = vsel %vm723, %v718, %v720
        %v725 = vsel %vm723, %v720, %v722
        %v727 = vsel %vm256, %v716, 0
        %v729 = vsel %vm260, %v724, 0
        %v731 = vsel %vm260, %v725, 0
        %733 = vmatprep.subr.mxu0 %v731
        %734 = vmatpush1.msra.mxu0 %v729
        %735 = vmatprep.subr.mxu0 0.0
        %736 = vmatpush1.msra.mxu0 0.0
        %737 = vmatprep.subr.mxu0 0.0
        %738 = vmatpush1.msra.mxu0 0.0
        %739 = vmatprep.subr.mxu0 0.0
        %740 = vmatpush1.msra.mxu0 0.0
        %741 = vmatprep.subr.mxu0 0.0
        %742 = vmatpush1.msra.mxu0 0.0
        %743 = vmatprep.subr.mxu0 0.0
        %744 = vmatpush1.msra.mxu0 0.0
        %745 = vmatprep.subr.mxu0 0.0
        %746 = vmatpush1.msra.mxu0 0.0
        %747 = vmatprep.subr.mxu0 0.0
        %748 = vmatpush1.msra.mxu0 0.0
        %749 = vmatprep.subr.mxu0 0.0
        %750 = vmatpush1.msra.mxu0 0.0
        %751 = vmatprep.subr.mxu0 0.0
        %752 = vmatpush1.msra.mxu0 0.0
        %753 = vmatprep.subr.mxu0 0.0
        %754 = vmatpush1.msra.mxu0 0.0
        %755 = vmatprep.subr.mxu0 0.0
        %756 = vmatpush1.msra.mxu0 0.0
        %757 = vmatprep.subr.mxu0 0.0
        %758 = vmatpush1.msra.mxu0 0.0
        %759 = vmatprep.subr.mxu0 0.0
        %760 = vmatpush1.msra.mxu0 0.0
        %761 = vmatprep.subr.mxu0 0.0
        %762 = vmatpush1.msra.mxu0 0.0
        %763 = vmatprep.subr.mxu0 0.0
        %764 = vmatpush1.msra.mxu0 0.0
        %765 = vmatprep.subr.mxu0 0.0
        %766 = vmatpush1.msra.mxu0 0.0
        %767 = vmatprep.subr.mxu0 0.0
        %768 = vmatpush1.msra.mxu0 0.0
        %769 = vmatprep.subr.mxu0 0.0
        %770 = vmatpush1.msra.mxu0 0.0
        %771 = vmatprep.subr.mxu0 0.0
        %772 = vmatpush1.msra.mxu0 0.0
        %773 = vmatprep.subr.mxu0 0.0
        %774 = vmatpush1.msra.mxu0 0.0
        %775 = vmatprep.subr.mxu0 0.0
        %776 = vmatpush1.msra.mxu0 0.0
        %777 = vmatprep.subr.mxu0 0.0
        %778 = vmatpush1.msra.mxu0 0.0
        %779 = vmatprep.subr.mxu0 0.0
        %780 = vmatpush1.msra.mxu0 0.0
        %781 = vmatprep.subr.mxu0 0.0
        %782 = vmatpush1.msra.mxu0 0.0
        %783 = vmatprep.subr.mxu0 0.0
        %784 = vmatpush1.msra.mxu0 0.0
        %785 = vmatprep.subr.mxu0 0.0
        %786 = vmatpush1.msra.mxu0 0.0
        %787 = vmatprep.subr.mxu0 0.0
        %788 = vmatpush1.msra.mxu0 0.0
        %789 = vmatprep.subr.mxu0 0.0
        %790 = vmatpush1.msra.mxu0 0.0
        %791 = vmatprep.subr.mxu0 0.0
        %792 = vmatpush1.msra.mxu0 0.0
        %793 = vmatprep.subr.mxu0 0.0
        %794 = vmatpush1.msra.mxu0 0.0
        %795 = vmatprep.subr.mxu0 0.0
        %796 = vmatpush1.msra.mxu0 0.0
        %797 = vmatprep.mubr.f32.mxu0 0.0
        %798 = vmatmul.mubr.f32.gmra.mrb[0].mxu0 %v727
        %v799 = vpop.f32.mrb[0].mxu0
        %v800 = vadd.f32 0.0, %v799
        %v801 = vpop.f32.mrb[0].mxu0
        %v802 = vadd.f32 0.0, %v801
        %803 = vdwg.mxu0
        %v804 = vadd.f32 %v711, %v800
        %v805 = vadd.f32 %v713, %v802
        %v806 = vadd.f32 %v535, %v804
        %v807 = vadd.f32 %v536, %v805
        %s808 = scalar_lea.vmem %s0, 16
        %v809 = vld [vmem:[%s808] sm:$0xff]
        %s810 = scalar_lea.vmem %s0, 40
        %v811 = vld [vmem:[%s810] sm:$0xff]
        %812 = vrot.lane.b32.xlu0 %v238, 95
        %v813 = vpop.permute.xlu0 %812
        %814 = vrot.lane.b32.xlu0 %v246, 95
        %v815 = vpop.permute.xlu0 %814
        %816 = vrot.lane.b32.xlu0 %v239, 95
        %v817 = vpop.permute.xlu0 %816
        %vm818 = vcmask 777216
        %v819 = vsel %vm818, %v813, %v815
        %v820 = vsel %vm818, %v815, %v817
        %v822 = vsel %vm256, %v811, 0
        %v824 = vsel %vm260, %v819, 0
        %v826 = vsel %vm260, %v820, 0
        %828 = vmatprep.subr.mxu0 %v826
        %829 = vmatpush1.msra.mxu0 %v824
        %830 = vmatprep.subr.mxu0 0.0
        %831 = vmatpush1.msra.mxu0 0.0
        %832 = vmatprep.subr.mxu0 0.0
        %833 = vmatpush1.msra.mxu0 0.0
        %834 = vmatprep.subr.mxu0 0.0
        %835 = vmatpush1.msra.mxu0 0.0
        %836 = vmatprep.subr.mxu0 0.0
        %837 = vmatpush1.msra.mxu0 0.0
        %838 = vmatprep.subr.mxu0 0.0
        %839 = vmatpush1.msra.mxu0 0.0
        %840 = vmatprep.subr.mxu0 0.0
        %841 = vmatpush1.msra.mxu0 0.0
        %842 = vmatprep.subr.mxu0 0.0
        %843 = vmatpush1.msra.mxu0 0.0
        %844 = vmatprep.subr.mxu0 0.0
        %845 = vmatpush1.msra.mxu0 0.0
        %846 = vmatprep.subr.mxu0 0.0
        %847 = vmatpush1.msra.mxu0 0.0
        %848 = vmatprep.subr.mxu0 0.0
        %849 = vmatpush1.msra.mxu0 0.0
        %850 = vmatprep.subr.mxu0 0.0
        %851 = vmatpush1.msra.mxu0 0.0
        %852 = vmatprep.subr.mxu0 0.0
        %853 = vmatpush1.msra.mxu0 0.0
        %854 = vmatprep.subr.mxu0 0.0
        %855 = vmatpush1.msra.mxu0 0.0
        %856 = vmatprep.subr.mxu0 0.0
        %857 = vmatpush1.msra.mxu0 0.0
        %858 = vmatprep.subr.mxu0 0.0
        %859 = vmatpush1.msra.mxu0 0.0
        %860 = vmatprep.subr.mxu0 0.0
        %861 = vmatpush1.msra.mxu0 0.0
        %862 = vmatprep.subr.mxu0 0.0
        %863 = vmatpush1.msra.mxu0 0.0
        %864 = vmatprep.subr.mxu0 0.0
        %865 = vmatpush1.msra.mxu0 0.0
        %866 = vmatprep.subr.mxu0 0.0
        %867 = vmatpush1.msra.mxu0 0.0
        %868 = vmatprep.subr.mxu0 0.0
        %869 = vmatpush1.msra.mxu0 0.0
        %870 = vmatprep.subr.mxu0 0.0
        %871 = vmatpush1.msra.mxu0 0.0
        %872 = vmatprep.subr.mxu0 0.0
        %873 = vmatpush1.msra.mxu0 0.0
        %874 = vmatprep.subr.mxu0 0.0
        %875 = vmatpush1.msra.mxu0 0.0
        %876 = vmatprep.subr.mxu0 0.0
        %877 = vmatpush1.msra.mxu0 0.0
        %878 = vmatprep.subr.mxu0 0.0
        %879 = vmatpush1.msra.mxu0 0.0
        %880 = vmatprep.subr.mxu0 0.0
        %881 = vmatpush1.msra.mxu0 0.0
        %882 = vmatprep.subr.mxu0 0.0
        %883 = vmatpush1.msra.mxu0 0.0
        %884 = vmatprep.subr.mxu0 0.0
        %885 = vmatpush1.msra.mxu0 0.0
        %886 = vmatprep.subr.mxu0 0.0
        %887 = vmatpush1.msra.mxu0 0.0
        %888 = vmatprep.subr.mxu0 0.0
        %889 = vmatpush1.msra.mxu0 0.0
        %890 = vmatprep.subr.mxu0 0.0
        %891 = vmatpush1.msra.mxu0 0.0
        %892 = vmatprep.mubr.f32.mxu0 0.0
        %893 = vmatmul.mubr.f32.gmra.mrb[0].mxu0 %v822
        %v894 = vpop.f32.mrb[0].mxu0
        %v895 = vadd.f32 0.0, %v894
        %v896 = vpop.f32.mrb[0].mxu0
        %v897 = vadd.f32 0.0, %v896
        %898 = vdwg.mxu0
        %899 = vrot.lane.b32.xlu0 %v238, 111
        %v900 = vpop.permute.xlu0 %899
        %901 = vrot.lane.b32.xlu0 %v246, 111
        %v902 = vpop.permute.xlu0 %901
        %903 = vrot.lane.b32.xlu0 %v239, 111
        %v904 = vpop.permute.xlu0 %903
        %vm905 = vcmask 908288
        %v906 = vsel %vm905, %v900, %v902
        %v907 = vsel %vm905, %v902, %v904
        %v909 = vsel %vm256, %v809, 0
        %v911 = vsel %vm260, %v906, 0
        %v913 = vsel %vm260, %v907, 0
        %915 = vmatprep.subr.mxu0 %v913
        %916 = vmatpush1.msra.mxu0 %v911
        %917 = vmatprep.subr.mxu0 0.0
        %918 = vmatpush1.msra.mxu0 0.0
        %919 = vmatprep.subr.mxu0 0.0
        %920 = vmatpush1.msra.mxu0 0.0
        %921 = vmatprep.subr.mxu0 0.0
        %922 = vmatpush1.msra.mxu0 0.0
        %923 = vmatprep.subr.mxu0 0.0
        %924 = vmatpush1.msra.mxu0 0.0
        %925 = vmatprep.subr.mxu0 0.0
        %926 = vmatpush1.msra.mxu0 0.0
        %927 = vmatprep.subr.mxu0 0.0
        %928 = vmatpush1.msra.mxu0 0.0
        %929 = vmatprep.subr.mxu0 0.0
        %930 = vmatpush1.msra.mxu0 0.0
        %931 = vmatprep.subr.mxu0 0.0
        %932 = vmatpush1.msra.mxu0 0.0
        %933 = vmatprep.subr.mxu0 0.0
        %934 = vmatpush1.msra.mxu0 0.0
        %935 = vmatprep.subr.mxu0 0.0
        %936 = vmatpush1.msra.mxu0 0.0
        %937 = vmatprep.subr.mxu0 0.0
        %938 = vmatpush1.msra.mxu0 0.0
        %939 = vmatprep.subr.mxu0 0.0
        %940 = vmatpush1.msra.mxu0 0.0
        %941 = vmatprep.subr.mxu0 0.0
        %942 = vmatpush1.msra.mxu0 0.0
        %943 = vmatprep.subr.mxu0 0.0
        %944 = vmatpush1.msra.mxu0 0.0
        %945 = vmatprep.subr.mxu0 0.0
        %946 = vmatpush1.msra.mxu0 0.0
        %947 = vmatprep.subr.mxu0 0.0
        %948 = vmatpush1.msra.mxu0 0.0
        %949 = vmatprep.subr.mxu0 0.0
        %950 = vmatpush1.msra.mxu0 0.0
        %951 = vmatprep.subr.mxu0 0.0
        %952 = vmatpush1.msra.mxu0 0.0
        %953 = vmatprep.subr.mxu0 0.0
        %954 = vmatpush1.msra.mxu0 0.0
        %955 = vmatprep.subr.mxu0 0.0
        %956 = vmatpush1.msra.mxu0 0.0
        %957 = vmatprep.subr.mxu0 0.0
        %958 = vmatpush1.msra.mxu0 0.0
        %959 = vmatprep.subr.mxu0 0.0
        %960 = vmatpush1.msra.mxu0 0.0
        %961 = vmatprep.subr.mxu0 0.0
        %962 = vmatpush1.msra.mxu0 0.0
        %963 = vmatprep.subr.mxu0 0.0
        %964 = vmatpush1.msra.mxu0 0.0
        %965 = vmatprep.subr.mxu0 0.0
        %966 = vmatpush1.msra.mxu0 0.0
        %967 = vmatprep.subr.mxu0 0.0
        %968 = vmatpush1.msra.mxu0 0.0
        %969 = vmatprep.subr.mxu0 0.0
        %970 = vmatpush1.msra.mxu0 0.0
        %971 = vmatprep.subr.mxu0 0.0
        %972 = vmatpush1.msra.mxu0 0.0
        %973 = vmatprep.subr.mxu0 0.0
        %974 = vmatpush1.msra.mxu0 0.0
        %975 = vmatprep.subr.mxu0 0.0
        %976 = vmatpush1.msra.mxu0 0.0
        %977 = vmatprep.subr.mxu0 0.0
        %978 = vmatpush1.msra.mxu0 0.0
        %979 = vmatprep.mubr.f32.mxu0 0.0
        %980 = vmatmul.mubr.f32.gmra.mrb[0].mxu0 %v909
        %v981 = vpop.f32.mrb[0].mxu0
        %v982 = vadd.f32 %v895, %v981
        %v983 = vpop.f32.mrb[0].mxu0
        %v984 = vadd.f32 %v897, %v983
        %985 = vdwg.mxu0
        %s986 = scalar_lea.vmem %s0, 64
        %v987 = vld [vmem:[%s986] sm:$0xff]
        %988 = vrot.lane.b32.xlu0 %v238, 79
        %v989 = vpop.permute.xlu0 %988
        %990 = vrot.lane.b32.xlu0 %v246, 79
        %v991 = vpop.permute.xlu0 %990
        %992 = vrot.lane.b32.xlu0 %v239, 79
        %v993 = vpop.permute.xlu0 %992
        %vm994 = vcmask 646144
        %v995 = vsel %vm994, %v989, %v991
        %v996 = vsel %vm994, %v991, %v993
        %v998 = vsel %vm256, %v987, 0
        %v1000 = vsel %vm260, %v995, 0
        %v1002 = vsel %vm260, %v996, 0
        %1004 = vmatprep.subr.mxu0 %v1002
        %1005 = vmatpush1.msra.mxu0 %v1000
        %1006 = vmatprep.subr.mxu0 0.0
        %1007 = vmatpush1.msra.mxu0 0.0
        %1008 = vmatprep.subr.mxu0 0.0
        %1009 = vmatpush1.msra.mxu0 0.0
        %1010 = vmatprep.subr.mxu0 0.0
        %1011 = vmatpush1.msra.mxu0 0.0
        %1012 = vmatprep.subr.mxu0 0.0
        %1013 = vmatpush1.msra.mxu0 0.0
        %1014 = vmatprep.subr.mxu0 0.0
        %1015 = vmatpush1.msra.mxu0 0.0
        %1016 = vmatprep.subr.mxu0 0.0
        %1017 = vmatpush1.msra.mxu0 0.0
        %1018 = vmatprep.subr.mxu0 0.0
        %1019 = vmatpush1.msra.mxu0 0.0
        %1020 = vmatprep.subr.mxu0 0.0
        %1021 = vmatpush1.msra.mxu0 0.0
        %1022 = vmatprep.subr.mxu0 0.0
        %1023 = vmatpush1.msra.mxu0 0.0
        %1024 = vmatprep.subr.mxu0 0.0
        %1025 = vmatpush1.msra.mxu0 0.0
        %1026 = vmatprep.subr.mxu0 0.0
        %1027 = vmatpush1.msra.mxu0 0.0
        %1028 = vmatprep.subr.mxu0 0.0
        %1029 = vmatpush1.msra.mxu0 0.0
        %1030 = vmatprep.subr.mxu0 0.0
        %1031 = vmatpush1.msra.mxu0 0.0
        %1032 = vmatprep.subr.mxu0 0.0
        %1033 = vmatpush1.msra.mxu0 0.0
        %1034 = vmatprep.subr.mxu0 0.0
        %1035 = vmatpush1.msra.mxu0 0.0
        %1036 = vmatprep.subr.mxu0 0.0
        %1037 = vmatpush1.msra.mxu0 0.0
        %1038 = vmatprep.subr.mxu0 0.0
        %1039 = vmatpush1.msra.mxu0 0.0
        %1040 = vmatprep.subr.mxu0 0.0
        %1041 = vmatpush1.msra.mxu0 0.0
        %1042 = vmatprep.subr.mxu0 0.0
        %1043 = vmatpush1.msra.mxu0 0.0
        %1044 = vmatprep.subr.mxu0 0.0
        %1045 = vmatpush1.msra.mxu0 0.0
        %1046 = vmatprep.subr.mxu0 0.0
        %1047 = vmatpush1.msra.mxu0 0.0
        %1048 = vmatprep.subr.mxu0 0.0
        %1049 = vmatpush1.msra.mxu0 0.0
        %1050 = vmatprep.subr.mxu0 0.0
        %1051 = vmatpush1.msra.mxu0 0.0
        %1052 = vmatprep.subr.mxu0 0.0
        %1053 = vmatpush1.msra.mxu0 0.0
        %1054 = vmatprep.subr.mxu0 0.0
        %1055 = vmatpush1.msra.mxu0 0.0
        %1056 = vmatprep.subr.mxu0 0.0
        %1057 = vmatpush1.msra.mxu0 0.0
        %1058 = vmatprep.subr.mxu0 0.0
        %1059 = vmatpush1.msra.mxu0 0.0
        %1060 = vmatprep.subr.mxu0 0.0
        %1061 = vmatpush1.msra.mxu0 0.0
        %1062 = vmatprep.subr.mxu0 0.0
        %1063 = vmatpush1.msra.mxu0 0.0
        %1064 = vmatprep.subr.mxu0 0.0
        %1065 = vmatpush1.msra.mxu0 0.0
        %1066 = vmatprep.subr.mxu0 0.0
        %1067 = vmatpush1.msra.mxu0 0.0
        %1068 = vmatprep.mubr.f32.mxu0 0.0
        %1069 = vmatmul.mubr.f32.gmra.mrb[0].mxu0 %v998
        %v1070 = vpop.f32.mrb[0].mxu0
        %v1071 = vadd.f32 0.0, %v1070
        %v1072 = vpop.f32.mrb[0].mxu0
        %v1073 = vadd.f32 0.0, %v1072
        %1074 = vdwg.mxu0
        %v1075 = vadd.f32 %v982, %v1071
        %v1076 = vadd.f32 %v984, %v1073
        %v1077 = vlaneseq
        %v1078 = vshrl.u32 %v1077, 7
        %v1079 = vsub.s32 1, %v1078
        %v1080 = vrot.slane %v240, %v1079
        %v1081 = vlaneseq
        %v1082 = vshrl.u32 %v1081, 7
        %v1083 = vsub.s32 3, %v1082
        %v1084 = vrot.slane %v240, %v1083
        %v1087 = vlaneseq
        %v1088 = vshrl.u32 %v1087, 7
        %v1089 = vsub.s32 1, %v1088
        %v1090 = vrot.slane %v1080, %v1089
        %v1091 = vlaneseq
        %v1092 = vshrl.u32 %v1091, 7
        %v1093 = vsub.s32 1, %v1092
        %v1094 = vrot.slane %v1084, %v1093
        %v1095 = vmul.f32 %v1075, %v1090
        %v1096 = vmul.f32 %v1076, %v1094
        %v1097 = vadd.f32 %v806, %v1095
        %v1098 = vadd.f32 %v807, %v1096
        %v1099 = vld [vmem:[%s1] sm:$0xff]
        %1101 = vset.pattern.permute.xlu0 0
        %1102 = vperm.xlu0 %1101, %v1099
        %v1103 = vpop.permute.xlu0 %1102
        %v1105 = vadd.f32 %v1097, %v1103
        %v1106 = vadd.f32 %v1098, %v1103
        %vm1107 = vcmp.ge.f32.partialorder %v1105, 0.0
        %vm1108 = vcmp.ge.f32.partialorder %v1106, 0.0
        %v1109 = vmul.f32 %v1105, 0.1
        %v1110 = vmul.f32 %v1106, 0.1
        %v1111 = vsel %vm1107, %v1105, %v1109
        %v1112 = vsel %vm1108, %v1106, %v1110
        %1113 = vst [vmem:[%s220] sm:$0xff] %v1111
        %1114 = vst [vmem:[%s220 + $0x8] sm:$0xff] %v1112
        %s1115 = sand.u32 %s134, 1
        %s1116 = scalar_lea.sflag [#allocation3], %s1115
        %s1117 = sand.u32 %s134, 1
        %s1118 = smul.addr %s1117, 16
        %s1119 = scalar_lea.vmem [#allocation2], %s1118
        // Predicated region
        $region37: #{tpu_custom_call.1} parent=35 // pred_check
          %p1120 = pneg %p144
        $region38: #{tpu_custom_call.1} parent=35 // pred_check_branch
          %1122 = sbr.rel (%p1120) target = $region40
        $region39: #{tpu_custom_call.1} parent=35 // pred_region
          %s1123 = smul.u32 2, %s23
          %s1125 = ssub.s32 256, 256
          %1126 = vsyncadd %s1116, %s1125
          %s1127 = smul.addr %s22, 2
          %s1128 = sadd.s32 %s1123, %s1127
          %s1129 = smul.addr %s1128, 128
          %s1130 = scalar_lea.hbm %s4, %s1129
          %s1132 = sshll.u32 %s1119, 4
          %s1133 = int_to_ptr.vmem [resolvable:$true] %s1132
          %1135 = dma.vmem_to_hbm [thread:$0]  %s1133, 256, %s1130, %s1116
        $region40: #{tpu_custom_call.1} parent=35 // pred_fallthru
          _
      $region36: #{tpu_custom_call.1} parent=5 // pred_fallthru
        _
      %p1136 = scmp.le.s32.totalorder 2, %s13
      // Predicated region
      $region41: #{tpu_custom_call.1} parent=5 // pred_check
        %p1137 = pneg %p1136
      $region42: #{tpu_custom_call.1} parent=5 // pred_check_branch
        %1139 = sbr.rel (%p1137) target = $region44
      $region43: #{tpu_custom_call.1} parent=5 // pred_region
        %s1140 = ssub.s32 %s13, 2
        // Predicated region
        $region45: #{tpu_custom_call.1} parent=43 // pred_check
          %p1141 = pneg %p150
        $region46: #{tpu_custom_call.1} parent=43 // pred_check_branch
          %1143 = sbr.rel (%p1141) target = $region48
        $region47: #{tpu_custom_call.1} parent=43 // pred_region
          %s1144 = sand.u32 %s135, 1
          %s1145 = scalar_lea.sflag [#allocation3], %s1144
          %s1146 = sand.u32 %s135, 1
          %s1147 = smul.addr %s1146, 16
          %s1148 = scalar_lea.vmem [#allocation2], %s1147
          %1149 = dma.done %s1145, 256
        $region48: #{tpu_custom_call.1} parent=43 // pred_fallthru
          _
      $region44: #{tpu_custom_call.1} parent=5 // pred_fallthru
        _
    $region6: #{tpu_custom_call.1} parent=1 // loop_footer
      %s17 = sadd.s32 1, %s13
    $region7: #{tpu_custom_call.1} parent=1 // loop_footer_branch
      %12 = sbr.rel target = $region3
    $region8: #{tpu_custom_call.1} parent=1 // loop_exit
      _
    %1150 = vsyncpa [#allocation3], 1
    %s1151 = scalar_lea.sflag [#allocation3], 1
    %1152 = vsyncpa %s1151, 1

</llo_original>
